<compile_context>
chip_gen: v7x
topology: tpu7x:2x2x1
jax: 0.10.0
libtpu: 0.0.40
codegen_flags: <defaults>
</compile_context>

<pallas_src>
import math

import numpy as np

import jax
import jax.numpy as jnp
from jax.experimental import pallas as pl
from jax.experimental.pallas import tpu as pltpu


def _moving_avg_kernel(w_ref, x_ref, o_ref):
    # w_ref: (lo_tile, L)    f32 band matrix (window + edge padding + stride)
    # x_ref: (L, c_tile)     input tile: time on sublanes, channels on lanes
    # o_ref: (lo_tile, c_tile)
    x = x_ref[...].astype(jnp.float32)
    y = jnp.dot(
        w_ref[...],
        x,
        preferred_element_type=jnp.float32,
        precision=jax.lax.Precision.HIGHEST,
    )
    o_ref[...] = y.astype(o_ref.dtype)


def _band_matrix(L, kernel_size, stride, n_front, n_end):
    """(L_out, L) averaging matrix fusing edge replication + window + stride."""
    L_pad = L + n_front + n_end
    L_out = (L_pad - kernel_size) // stride + 1
    o_idx = np.repeat(np.arange(L_out), kernel_size)
    j_idx = np.tile(np.arange(kernel_size), L_out)
    t_idx = np.clip(o_idx * stride + j_idx - n_front, 0, L - 1)
    W = np.zeros((L_out, L), dtype=np.float32)
    np.add.at(W, (o_idx, t_idx), np.float32(1.0 / kernel_size))
    return W, L_out


def _round_down(v, m):
    return (v // m) * m


def moving_avg(x, kernel_size, stride):
    """Moving average over the time axis: x (B, L, C) -> (B, L_out, C).

    Matches the PyTorch module: replicate-pad ceil((k-1)/2) timesteps at the
    front and floor((k-1)/2) at the end, then AvgPool1d(kernel, stride, pad=0).
    """
    B, L, C = x.shape
    n_front = math.ceil((kernel_size - 1) / 2)
    n_end = (kernel_size - 1) // 2

    W_np, L_out = _band_matrix(L, kernel_size, stride, n_front, n_end)
    W = jnp.asarray(W_np)

    itemsize = jnp.dtype(x.dtype).itemsize
    target_block_bytes = 2 << 20  # ~2 MiB per block

    # Channel (lane) tile: multiple of 128, or the full axis when it fits.
    if C <= 128:
        c_tile = C
    else:
        cap = max(128, _round_down(target_block_bytes // max(L * itemsize, 1), 128))
        c_tile = C if cap >= C else cap
    n_c = pl.cdiv(C, c_tile)

    # Output-row (sublane) tile: multiple of 8; bounds the W block size.
    lo_cap = max(8, _round_down(target_block_bytes // max(L * 4, 1), 8))
    lo_tile = L_out if L_out <= lo_cap else lo_cap
    n_lo = pl.cdiv(L_out, lo_tile)

    # v7x has two TensorCores: avoid a degenerate single-step grid.
    if B * n_lo * n_c < 2 and L_out >= 16:
        lo_tile = max(8, _round_down((L_out + 1) // 2 + 7, 8))
        n_lo = pl.cdiv(L_out, lo_tile)

    grid = (B, n_lo, n_c)

    return pl.pallas_call(
        _moving_avg_kernel,
        out_shape=jax.ShapeDtypeStruct((B, L_out, C), x.dtype),
        grid=grid,
        in_specs=[
            pl.BlockSpec((lo_tile, L), lambda b, lo, c: (lo, 0)),
            pl.BlockSpec((None, L, c_tile), lambda b, lo, c: (b, 0, c)),
        ],
        out_specs=pl.BlockSpec((None, lo_tile, c_tile), lambda b, lo, c: (b, lo, c)),
        compiler_params=pltpu.CompilerParams(
            dimension_semantics=("parallel", "parallel", "parallel"),
            vmem_limit_bytes=32 * 1024 * 1024,
        ),
    )(W, x)


def _reference(x, kernel_size, stride):
    # Pure-JAX reference mirroring the PyTorch semantics exactly.
    n_front = math.ceil((kernel_size - 1) / 2)
    n_end = (kernel_size - 1) // 2
    front = jnp.repeat(x[:, 0:1, :], n_front, axis=1)
    end = jnp.repeat(x[:, -1:, :], n_end, axis=1)
    xp = jnp.concatenate([front, x, end], axis=1)
    L_pad = xp.shape[1]
    L_out = (L_pad - kernel_size) // stride + 1
    cols = [
        xp[:, o * stride:o * stride + kernel_size, :].mean(axis=1)
        for o in range(L_out)
    ]
    return jnp.stack(cols, axis=1)


if __name__ == "__main__":
    key = jax.random.PRNGKey(0)
    B, L, C = 2, 16, 8
    x = jax.random.normal(key, (B, L, C), dtype=jnp.float32)

    # Typical decomposition-block config: odd kernel, stride 1.
    out = jax.block_until_ready(moving_avg(x, kernel_size=5, stride=1))
    ref = _reference(x, 5, 1)
    assert out.shape == ref.shape, (out.shape, ref.shape)
    assert jnp.allclose(out, ref, atol=1e-5, rtol=1e-5), "mismatch (k=5,s=1)"

    # Even kernel (asymmetric padding) + stride > 1 (downsample path).
    out2 = jax.block_until_ready(moving_avg(x, kernel_size=4, stride=2))
    ref2 = _reference(x, 4, 2)
    assert out2.shape == ref2.shape, (out2.shape, ref2.shape)
    assert jnp.allclose(out2, ref2, atol=1e-5, rtol=1e-5), "mismatch (k=4,s=2)"

    # Larger window (k=25 is the common DLinear/Autoformer config).
    x3 = jax.random.normal(jax.random.PRNGKey(0), (2, 96, 8), dtype=jnp.float32)
    out3 = jax.block_until_ready(moving_avg(x3, kernel_size=25, stride=1))
    ref3 = _reference(x3, 25, 1)
    assert out3.shape == ref3.shape, (out3.shape, ref3.shape)
    assert jnp.allclose(out3, ref3, atol=1e-5, rtol=1e-5), "mismatch (k=25,s=1)"

    print("KERNEL_OK")
</pallas_src>

<mosaic_0001>
module attributes {stable_mosaic.version = 11 : i64} {
  func.func @_moving_avg_kernel(%arg0: i32, %arg1: i32, %arg2: i32, %arg3: memref<16x16xf32, #tpu.memory_space<vmem>>, %arg4: memref<1x16x8xf32, #tpu.memory_space<vmem>>, %arg5: memref<1x16x8xf32, #tpu.memory_space<vmem>>) attributes {dimension_semantics = [#tpu.dimension_semantics<parallel>, #tpu.dimension_semantics<parallel>, #tpu.dimension_semantics<parallel>], iteration_bounds = array<i64: 2, 1, 1>, scalar_prefetch = 0 : i64, scratch_operands = 0 : i64, tpu.core_type = #tpu.core_type<tc>, window_params = [{transform_indices = @transform_0, window_bounds = array<i64: 16, 16>}, {transform_indices = @transform_1, window_bounds = array<i64: 1, 16, 8>}, {transform_indices = @transform_2, window_bounds = array<i64: 1, 16, 8>}]} {
    %c0 = arith.constant 0 : index
    %c0_0 = arith.constant 0 : index
    %c0_1 = arith.constant 0 : index
    %0 = vector.load %arg4[%c0, %c0_0, %c0_1] : memref<1x16x8xf32, #tpu.memory_space<vmem>>, vector<1x16x8xf32>
    %1 = vector.shape_cast %0 : vector<1x16x8xf32> to vector<16x8xf32>
    %c0_2 = arith.constant 0 : index
    %c0_3 = arith.constant 0 : index
    %2 = vector.load %arg3[%c0_2, %c0_3] : memref<16x16xf32, #tpu.memory_space<vmem>>, vector<16x16xf32>
    %cst = arith.constant dense<0.000000e+00> : vector<16x8xf32>
    %3 = tpu.matmul %2, %1, %cst {dimension_numbers = #tpu.dot_dimension_numbers<[1], [0], [0], [1], [0, 0, 1, 1], [], []>, precision = #tpu.contract_precision<fp32>} : vector<16x16xf32>, vector<16x8xf32>, vector<16x8xf32> -> vector<16x8xf32>
    %c0_4 = arith.constant 0 : index
    %c0_5 = arith.constant 0 : index
    %c0_6 = arith.constant 0 : index
    %4 = vector.load %arg5[%c0_4, %c0_5, %c0_6] : memref<1x16x8xf32, #tpu.memory_space<vmem>>, vector<1x16x8xf32>
    %5 = vector.shape_cast %4 : vector<1x16x8xf32> to vector<16x8xf32>
    %6 = vector.shape_cast %3 : vector<16x8xf32> to vector<1x16x8xf32>
    tpu.vector_store %arg5[%c0_4, %c0_5, %c0_6], %6 {strides = array<i32>} : memref<1x16x8xf32, #tpu.memory_space<vmem>>, vector<1x16x8xf32>,
    return
  }
  func.func @transform_0(%arg0: i32, %arg1: i32, %arg2: i32) -> (i32, i32) {
    %c0_i32 = arith.constant 0 : i32
    %c0_i32_0 = arith.constant 0 : i32
    return %arg1, %c0_i32 : i32, i32
  }
  func.func @transform_1(%arg0: i32, %arg1: i32, %arg2: i32) -> (i32, i32, i32) {
    %c0_i32 = arith.constant 0 : i32
    %c0_i32_0 = arith.constant 0 : i32
    return %arg0, %c0_i32, %arg2 : i32, i32, i32
  }
  func.func @transform_2(%arg0: i32, %arg1: i32, %arg2: i32) -> (i32, i32, i32) {
    %c0_i32 = arith.constant 0 : i32
    return %arg0, %arg1, %arg2 : i32, i32, i32
  }
}

</mosaic_0001>

<llo_original>
// kernel: tpu_custom_call.1
$region0: #{tpu_custom_call.1}
  #allocation0 [shape = 'u32[]', space=smem, size = 0x4, offset = 0x4, fixed_abs, tag = 'smem constant byte address 0x4 - core index']
  #allocation1 [shape = 'u32[144,128]{1,0:T(1,128)}', space=vmem, size = 0x12000, scoped, tag = 'internal scratch']
  %s0 = inlined_call_operand.vmem [shape: f32[16,16], index: 0, kind: input, shape index: {}]
  %s1 = inlined_call_operand.vmem [shape: f32[2,16,8], index: 1, kind: input, shape index: {}]
  %s2 = inlined_call_operand.vmem [shape: f32[2,16,8], index: 2, kind: output, shape index: {}]
  %s3 = sld [smem:[#allocation0]]
  $region41: #{tpu_custom_call.1} parent=0
    _
  %s5 = ssub.s32 1, %s3
  %s6 = scalar_select 0, %s5, %s3
  loop: start=0, step=1, limit=4
  $region2: #{tpu_custom_call.1} parent=0 // loop_pre_header
    _
  $region3: #{tpu_custom_call.1} parent=0 // loop_header
    %s8 = sphi 0, %s12
    %p9 = scmp.ge.s32.totalorder %s8, 4
    %s15 = sphi 0, %s34
    %s16 = sphi 0, %s30
    %s17 = sphi 0, %s26
    %s18 = sphi 0, %s15
    %s19 = sphi 0, %s16
    %s20 = sphi 0, %s17
    %s21 = sphi 0, %s18
    %s22 = sphi 0, %s19
    %s23 = sphi 0, %s20
    %s37 = sphi 0, %s39
    %s40 = sphi 0, %s37
    %s41 = sphi 0, %s40
    %s57 = sphi 0, %s41
    %s65 = sphi 0, %s67
    %s68 = sphi 0, %s65
    %s69 = sphi 0, %s68
    %s85 = sphi 0, %s69
    %s95 = sphi 0, %s97
    %s98 = sphi 0, %s95
    %s99 = sphi 0, %s98
    %s115 = sphi 0, %s99
  $region4: #{tpu_custom_call.1} parent=0 // loop_header_branch
    %11 = sbr.rel (%p9) target = $region8
  $region5: #{tpu_custom_call.1} parent=0 // loop_body
    %s13 = ssub.s32 %s8, 1
    %s14 = ssub.s32 %s8, 2
    %s24 = sadd.s32 1, %s17
    %p25 = scmp.ge.s32.totalorder %s24, 1
    %s26 = scalar_select %p25, 0, %s24
    %s27 = sadd.s32 1, %s16
    %s28 = scalar_select %p25, %s27, %s16
    %p29 = scmp.ge.s32.totalorder %s28, 1
    %s30 = scalar_select %p29, 0, %s28
    %s31 = sadd.s32 1, %s15
    %s32 = scalar_select %p29, %s31, %s15
    %p33 = scmp.ge.s32.totalorder %s32, 2
    %s34 = scalar_select %p33, 0, %s32
    %s35 = ssub.s32 %s16, %s30
    %p36 = scmp.eq.s32.totalorder %s35, 0
    %s38 = sadd.s32 %s37, 1
    %s39 = scalar_select %p36, %s37, %s38
    %p42 = pneg %p36
    %p43 = scmp.eq.s32.totalorder %s8, 1
    %p44 = por %p42, %p43
    %p45 = scmp.ne.s32.totalorder %s37, %s40
    %p46 = scmp.eq.s32.totalorder %s8, 0
    %p47 = por %p45, %p46
    %p48 = scmp.ne.s32.totalorder %s37, %s40
    %p49 = scmp.eq.s32.totalorder %s13, 1
    %p50 = por %p48, %p49
    %p51 = scmp.ne.s32.totalorder %s40, %s41
    %p52 = scmp.eq.s32.totalorder %s13, 0
    %p53 = por %p51, %p52
    %p54 = scmp.ne.s32.totalorder %s40, %s41
    %p55 = scmp.eq.s32.totalorder %s14, 1
    %p56 = por %p54, %p55
    %p58 = scmp.ne.s32.totalorder %s41, %s57
    %p59 = scmp.eq.s32.totalorder %s14, 0
    %p60 = por %p58, %p59
    %s61 = ssub.s32 %s15, %s34
    %s62 = ssub.s32 %s17, %s26
    %s63 = sor.u32 %s61, %s62
    %p64 = scmp.eq.s32.totalorder %s63, 0
    %s66 = sadd.s32 %s65, 1
    %s67 = scalar_select %p64, %s65, %s66
    %p70 = pneg %p64
    %p71 = scmp.eq.s32.totalorder %s8, 1
    %p72 = por %p70, %p71
    %p73 = scmp.ne.s32.totalorder %s65, %s68
    %p74 = scmp.eq.s32.totalorder %s8, 0
    %p75 = por %p73, %p74
    %p76 = scmp.ne.s32.totalorder %s65, %s68
    %p77 = scmp.eq.s32.totalorder %s13, 1
    %p78 = por %p76, %p77
    %p79 = scmp.ne.s32.totalorder %s68, %s69
    %p80 = scmp.eq.s32.totalorder %s13, 0
    %p81 = por %p79, %p80
    %p82 = scmp.ne.s32.totalorder %s68, %s69
    %p83 = scmp.eq.s32.totalorder %s14, 1
    %p84 = por %p82, %p83
    %p86 = scmp.ne.s32.totalorder %s69, %s85
    %p87 = scmp.eq.s32.totalorder %s14, 0
    %p88 = por %p86, %p87
    %s89 = ssub.s32 %s15, %s34
    %s90 = ssub.s32 %s16, %s30
    %s91 = sor.u32 %s89, %s90
    %s92 = ssub.s32 %s17, %s26
    %s93 = sor.u32 %s91, %s92
    %p94 = scmp.eq.s32.totalorder %s93, 0
    %s96 = sadd.s32 %s95, 1
    %s97 = scalar_select %p94, %s95, %s96
    %p100 = pneg %p94
    %p101 = scmp.eq.s32.totalorder %s8, 1
    %p102 = por %p100, %p101
    %p103 = scmp.ne.s32.totalorder %s95, %s98
    %p104 = scmp.eq.s32.totalorder %s8, 0
    %p105 = por %p103, %p104
    %p106 = scmp.ne.s32.totalorder %s95, %s98
    %p107 = scmp.eq.s32.totalorder %s13, 1
    %p108 = por %p106, %p107
    %p109 = scmp.ne.s32.totalorder %s98, %s99
    %p110 = scmp.eq.s32.totalorder %s13, 0
    %p111 = por %p109, %p110
    %p112 = scmp.ne.s32.totalorder %s98, %s99
    %p113 = scmp.eq.s32.totalorder %s14, 1
    %p114 = por %p112, %p113
    %p116 = scmp.ne.s32.totalorder %s99, %s115
    %p117 = scmp.eq.s32.totalorder %s14, 0
    %p118 = por %p116, %p117
    %p119 = scmp.le.s32.totalorder 1, %s8
    %p120 = scmp.lt.s32.totalorder %s8, 3
    %p121 = pnand %p119, %p120
    %p122 = pneg %p121
    // Predicated region
    $region9: #{tpu_custom_call.1} parent=5 // pred_check
      _
    $region10: #{tpu_custom_call.1} parent=5 // pred_check_branch
      %124 = sbr.rel (%p121) target = $region12
    $region11: #{tpu_custom_call.1} parent=5 // pred_region
      %s125 = ssub.s32 %s8, 1
      // Predicated region
      $region13: #{tpu_custom_call.1} parent=11 // pred_check
        %p126 = pneg %p53
      $region14: #{tpu_custom_call.1} parent=11 // pred_check_branch
        %128 = sbr.rel (%p126) target = $region16
      $region15: #{tpu_custom_call.1} parent=11 // pred_region
        %s129 = smul.u32 2, %s19
        %p130 = scmp.lt.s32.totalorder %s129, 1
        %s131 = scalar_select %p130, %s129, 1
        %s132 = smul.addr %s131, 8
        %s133 = scalar_lea.vmem %s0, %s132
        %s134 = smul.u32 2, %s19
      $region16: #{tpu_custom_call.1} parent=11 // pred_fallthru
        _
    $region12: #{tpu_custom_call.1} parent=5 // pred_fallthru
      _
    %p135 = scmp.lt.s32.totalorder %s8, 2
    // Predicated region
    $region17: #{tpu_custom_call.1} parent=5 // pred_check
      %p136 = pneg %p135
    $region18: #{tpu_custom_call.1} parent=5 // pred_check_branch
      %138 = sbr.rel (%p136) target = $region20
    $region19: #{tpu_custom_call.1} parent=5 // pred_region
      // Predicated region
      $region21: #{tpu_custom_call.1} parent=19 // pred_check
        %p139 = pneg %p75
      $region22: #{tpu_custom_call.1} parent=19 // pred_check_branch
        %141 = sbr.rel (%p139) target = $region24
      $region23: #{tpu_custom_call.1} parent=19 // pred_region
        %p142 = scmp.lt.s32.totalorder %s15, 1
        %s143 = scalar_select %p142, %s15, 1
        %p144 = scmp.lt.s32.totalorder %s17, 0
        %s145 = scalar_select %p144, %s17, 0
        %s146 = smul.addr %s143, 2
        %s147 = sadd.s32 %s145, %s146
        %s148 = smul.addr %s147, 8
        %s149 = scalar_lea.vmem %s1, %s148
      $region24: #{tpu_custom_call.1} parent=19 // pred_fallthru
        _
    $region20: #{tpu_custom_call.1} parent=5 // pred_fallthru
      _
    %p150 = scmp.le.s32.totalorder 1, %s8
    %p151 = scmp.lt.s32.totalorder %s8, 3
    %p152 = pnand %p150, %p151
    %p153 = pneg %p152
    // Predicated region
    $region25: #{tpu_custom_call.1} parent=5 // pred_check
      _
    $region26: #{tpu_custom_call.1} parent=5 // pred_check_branch
      %155 = sbr.rel (%p152) target = $region28
    $region27: #{tpu_custom_call.1} parent=5 // pred_region
      %s156 = ssub.s32 %s8, 1
      %s157 = smul.u32 2, %s19
      %p158 = scmp.lt.s32.totalorder %s157, 1
      %s159 = scalar_select %p158, %s157, 1
      %s160 = smul.addr %s159, 8
      %s161 = scalar_lea.vmem %s0, %s160
      %p162 = pneg %p53
      %p163 = pneg %p50
      %p164 = scmp.lt.s32.totalorder %s18, 1
      %s165 = scalar_select %p164, %s18, 1
      %p166 = scmp.lt.s32.totalorder %s20, 0
      %s167 = scalar_select %p166, %s20, 0
      %s168 = smul.addr %s165, 2
      %s169 = sadd.s32 %s167, %s168
      %s170 = smul.addr %s169, 8
      %s171 = scalar_lea.vmem %s1, %s170
      %p172 = pneg %p81
      %p173 = pneg %p78
      %p174 = pneg %p111
      %p175 = pneg %p108
      %s176 = smul.u32 2, %s19
      %p177 = scmp.lt.s32.totalorder %s18, 1
      %s178 = scalar_select %p177, %s18, 1
      %p179 = scmp.lt.s32.totalorder %s176, 1
      %s180 = scalar_select %p179, %s176, 1
      %p181 = scmp.lt.s32.totalorder %s20, 0
      %s182 = scalar_select %p181, %s20, 0
      %s183 = sadd.s32 %s182, %s180
      %s184 = smul.addr %s178, 2
      %s185 = sadd.s32 %s183, %s184
      %s186 = smul.addr %s185, 8
      %s187 = scalar_lea.vmem %s2, %s186
      %s188 = smul.u32 2, %s19
      %p189 = scmp.lt.s32.totalorder %s188, 1
      %s190 = scalar_select %p189, %s188, 1
      %s191 = smul.addr %s190, 8
      %s192 = scalar_lea.vmem %s0, %s191
      %s193 = smul.u32 2, %s19
      %p194 = scmp.lt.s32.totalorder %s18, 1
      %s195 = scalar_select %p194, %s18, 1
      %p196 = scmp.lt.s32.totalorder %s20, 0
      %s197 = scalar_select %p196, %s20, 0
      %s198 = smul.addr %s195, 2
      %s199 = sadd.s32 %s197, %s198
      %s200 = smul.addr %s199, 8
      %s201 = scalar_lea.vmem %s1, %s200
      %s202 = smul.u32 2, %s19
      %p203 = scmp.lt.s32.totalorder %s18, 1
      %s204 = scalar_select %p203, %s18, 1
      %p205 = scmp.lt.s32.totalorder %s202, 1
      %s206 = scalar_select %p205, %s202, 1
      %p207 = scmp.lt.s32.totalorder %s20, 0
      %s208 = scalar_select %p207, %s20, 0
      %s209 = sadd.s32 %s208, %s206
      %s210 = smul.addr %s204, 2
      %s211 = sadd.s32 %s209, %s210
      %s212 = smul.addr %s211, 8
      %s213 = scalar_lea.vmem %s2, %s212
      %s214 = smul.u32 2, %s19
      %v215 = vld [vmem:[%s201] sm:$0xff]
      %v216 = vld [vmem:[%s201 + $0x8] sm:$0xff]
      %v217 = vld [vmem:[%s192] sm:$0xff]
      %v218 = vld [vmem:[%s192 + $0x8] sm:$0xff]
      %vm219 = vcmask 130048
      %v221 = vsel %vm219, %v217, 0
      %v224 = vsel %vm219, %v218, 0
      %226 = vmatprep.subr.mxu0 0.0
      %v227 = vand.u32 %v215, 4294901760
      %228 = vmatpush1.msra.mxu0 %v227
      %229 = vmatprep.subr.mxu0 0.0
      %v230 = vand.u32 %v216, 4294901760
      %231 = vmatpush1.msra.mxu0 %v230
      %232 = vmatprep.subr.mxu0 0.0
      %233 = vmatpush1.msra.mxu0 0.0
      %234 = vmatprep.subr.mxu0 0.0
      %235 = vmatpush1.msra.mxu0 0.0
      %236 = vmatprep.subr.mxu0 0.0
      %237 = vmatpush1.msra.mxu0 0.0
      %238 = vmatprep.subr.mxu0 0.0
      %239 = vmatpush1.msra.mxu0 0.0
      %240 = vmatprep.subr.mxu0 0.0
      %241 = vmatpush1.msra.mxu0 0.0
      %242 = vmatprep.subr.mxu0 0.0
      %243 = vmatpush1.msra.mxu0 0.0
      %244 = vmatprep.subr.mxu0 0.0
      %245 = vmatpush1.msra.mxu0 0.0
      %246 = vmatprep.subr.mxu0 0.0
      %247 = vmatpush1.msra.mxu0 0.0
      %248 = vmatprep.subr.mxu0 0.0
      %249 = vmatpush1.msra.mxu0 0.0
      %250 = vmatprep.subr.mxu0 0.0
      %251 = vmatpush1.msra.mxu0 0.0
      %252 = vmatprep.subr.mxu0 0.0
      %253 = vmatpush1.msra.mxu0 0.0
      %254 = vmatprep.subr.mxu0 0.0
      %255 = vmatpush1.msra.mxu0 0.0
      %256 = vmatprep.subr.mxu0 0.0
      %257 = vmatpush1.msra.mxu0 0.0
      %258 = vmatprep.subr.mxu0 0.0
      %259 = vmatpush1.msra.mxu0 0.0
      %260 = vmatprep.subr.mxu0 0.0
      %261 = vmatpush1.msra.mxu0 0.0
      %262 = vmatprep.subr.mxu0 0.0
      %263 = vmatpush1.msra.mxu0 0.0
      %264 = vmatprep.subr.mxu0 0.0
      %265 = vmatpush1.msra.mxu0 0.0
      %266 = vmatprep.subr.mxu0 0.0
      %267 = vmatpush1.msra.mxu0 0.0
      %268 = vmatprep.subr.mxu0 0.0
      %269 = vmatpush1.msra.mxu0 0.0
      %270 = vmatprep.subr.mxu0 0.0
      %271 = vmatpush1.msra.mxu0 0.0
      %272 = vmatprep.subr.mxu0 0.0
      %273 = vmatpush1.msra.mxu0 0.0
      %274 = vmatprep.subr.mxu0 0.0
      %275 = vmatpush1.msra.mxu0 0.0
      %276 = vmatprep.subr.mxu0 0.0
      %277 = vmatpush1.msra.mxu0 0.0
      %278 = vmatprep.subr.mxu0 0.0
      %279 = vmatpush1.msra.mxu0 0.0
      %280 = vmatprep.subr.mxu0 0.0
      %281 = vmatpush1.msra.mxu0 0.0
      %282 = vmatprep.subr.mxu0 0.0
      %283 = vmatpush1.msra.mxu0 0.0
      %284 = vmatprep.subr.mxu0 0.0
      %285 = vmatpush1.msra.mxu0 0.0
      %286 = vmatprep.subr.mxu0 0.0
      %287 = vmatpush1.msra.mxu0 0.0
      %288 = vmatprep.subr.mxu0 0.0
      %289 = vmatpush1.msra.mxu0 0.0
      %290 = vmatprep.subr.mxu0 0.0
      %291 = vmatpush1.msra.mxu0 0.0
      %292 = vmatprep.mubr.f32.mxu0 0.0
      %v293 = vand.u32 %v221, 4294901760
      %v294 = vsub.f32 %v221, %v293
      %v295 = vand.u32 %v294, 4294901760
      %v296 = vsub.f32 %v294, %v295
      %v297 = vand.u32 %v296, 4294901760
      %298 = vmatmul.mubr.f32.gmra.mrb[0].mxu0 %v297
      %v299 = vpop.f32.mrb[0].mxu0
      %v300 = vadd.f32 0.0, %v299
      %v301 = vpop.f32.mrb[0].mxu0
      %302 = vmatprep.mubr.f32.mxu0 0.0
      %v303 = vand.u32 %v224, 4294901760
      %v304 = vsub.f32 %v224, %v303
      %v305 = vand.u32 %v304, 4294901760
      %v306 = vsub.f32 %v304, %v305
      %v307 = vand.u32 %v306, 4294901760
      %308 = vmatmul.mubr.f32.gmra.mrb[0].mxu0 %v307
      %v309 = vpop.f32.mrb[0].mxu0
      %v310 = vadd.f32 0.0, %v309
      %v311 = vpop.f32.mrb[0].mxu0
      %312 = vdwg.mxu0
      %313 = vmatprep.subr.mxu0 0.0
      %v314 = vand.u32 %v215, 4294901760
      %v315 = vsub.f32 %v215, %v314
      %v316 = vand.u32 %v315, 4294901760
      %v317 = vsub.f32 %v315, %v316
      %v318 = vand.u32 %v317, 4294901760
      %319 = vmatpush1.msra.mxu0 %v318
      %320 = vmatprep.subr.mxu0 0.0
      %v321 = vand.u32 %v216, 4294901760
      %v322 = vsub.f32 %v216, %v321
      %v323 = vand.u32 %v322, 4294901760
      %v324 = vsub.f32 %v322, %v323
      %v325 = vand.u32 %v324, 4294901760
      %326 = vmatpush1.msra.mxu0 %v325
      %327 = vmatprep.subr.mxu0 0.0
      %328 = vmatpush1.msra.mxu0 0.0
      %329 = vmatprep.subr.mxu0 0.0
      %330 = vmatpush1.msra.mxu0 0.0
      %331 = vmatprep.subr.mxu0 0.0
      %332 = vmatpush1.msra.mxu0 0.0
      %333 = vmatprep.subr.mxu0 0.0
      %334 = vmatpush1.msra.mxu0 0.0
      %335 = vmatprep.subr.mxu0 0.0
      %336 = vmatpush1.msra.mxu0 0.0
      %337 = vmatprep.subr.mxu0 0.0
      %338 = vmatpush1.msra.mxu0 0.0
      %339 = vmatprep.subr.mxu0 0.0
      %340 = vmatpush1.msra.mxu0 0.0
      %341 = vmatprep.subr.mxu0 0.0
      %342 = vmatpush1.msra.mxu0 0.0
      %343 = vmatprep.subr.mxu0 0.0
      %344 = vmatpush1.msra.mxu0 0.0
      %345 = vmatprep.subr.mxu0 0.0
      %346 = vmatpush1.msra.mxu0 0.0
      %347 = vmatprep.subr.mxu0 0.0
      %348 = vmatpush1.msra.mxu0 0.0
      %349 = vmatprep.subr.mxu0 0.0
      %350 = vmatpush1.msra.mxu0 0.0
      %351 = vmatprep.subr.mxu0 0.0
      %352 = vmatpush1.msra.mxu0 0.0
      %353 = vmatprep.subr.mxu0 0.0
      %354 = vmatpush1.msra.mxu0 0.0
      %355 = vmatprep.subr.mxu0 0.0
      %356 = vmatpush1.msra.mxu0 0.0
      %357 = vmatprep.subr.mxu0 0.0
      %358 = vmatpush1.msra.mxu0 0.0
      %359 = vmatprep.subr.mxu0 0.0
      %360 = vmatpush1.msra.mxu0 0.0
      %361 = vmatprep.subr.mxu0 0.0
      %362 = vmatpush1.msra.mxu0 0.0
      %363 = vmatprep.subr.mxu0 0.0
      %364 = vmatpush1.msra.mxu0 0.0
      %365 = vmatprep.subr.mxu0 0.0
      %366 = vmatpush1.msra.mxu0 0.0
      %367 = vmatprep.subr.mxu0 0.0
      %368 = vmatpush1.msra.mxu0 0.0
      %369 = vmatprep.subr.mxu0 0.0
      %370 = vmatpush1.msra.mxu0 0.0
      %371 = vmatprep.subr.mxu0 0.0
      %372 = vmatpush1.msra.mxu0 0.0
      %373 = vmatprep.subr.mxu0 0.0
      %374 = vmatpush1.msra.mxu0 0.0
      %375 = vmatprep.subr.mxu0 0.0
      %376 = vmatpush1.msra.mxu0 0.0
      %377 = vmatprep.subr.mxu0 0.0
      %378 = vmatpush1.msra.mxu0 0.0
      %379 = vmatprep.subr.mxu0 0.0
      %380 = vmatpush1.msra.mxu0 0.0
      %381 = vmatprep.subr.mxu0 0.0
      %382 = vmatpush1.msra.mxu0 0.0
      %383 = vmatprep.subr.mxu0 0.0
      %384 = vmatpush1.msra.mxu0 0.0
      %385 = vmatprep.subr.mxu0 0.0
      %386 = vmatpush1.msra.mxu0 0.0
      %387 = vmatprep.mubr.f32.mxu0 0.0
      %v388 = vand.u32 %v221, 4294901760
      %389 = vmatmul.mubr.f32.gmra.mrb[0].mxu0 %v388
      %v390 = vpop.f32.mrb[0].mxu0
      %v391 = vadd.f32 %v300, %v390
      %v392 = vpop.f32.mrb[0].mxu0
      %393 = vmatprep.mubr.f32.mxu0 0.0
      %v394 = vand.u32 %v224, 4294901760
      %395 = vmatmul.mubr.f32.gmra.mrb[0].mxu0 %v394
      %v396 = vpop.f32.mrb[0].mxu0
      %v397 = vadd.f32 %v310, %v396
      %v398 = vpop.f32.mrb[0].mxu0
      %399 = vdwg.mxu0
      %400 = vmatprep.subr.mxu0 0.0
      %v401 = vand.u32 %v215, 4294901760
      %v402 = vsub.f32 %v215, %v401
      %403 = vmatpush1.msra.mxu0 %v402
      %404 = vmatprep.subr.mxu0 0.0
      %v405 = vand.u32 %v216, 4294901760
      %v406 = vsub.f32 %v216, %v405
      %407 = vmatpush1.msra.mxu0 %v406
      %408 = vmatprep.subr.mxu0 0.0
      %409 = vmatpush1.msra.mxu0 0.0
      %410 = vmatprep.subr.mxu0 0.0
      %411 = vmatpush1.msra.mxu0 0.0
      %412 = vmatprep.subr.mxu0 0.0
      %413 = vmatpush1.msra.mxu0 0.0
      %414 = vmatprep.subr.mxu0 0.0
      %415 = vmatpush1.msra.mxu0 0.0
      %416 = vmatprep.subr.mxu0 0.0
      %417 = vmatpush1.msra.mxu0 0.0
      %418 = vmatprep.subr.mxu0 0.0
      %419 = vmatpush1.msra.mxu0 0.0
      %420 = vmatprep.subr.mxu0 0.0
      %421 = vmatpush1.msra.mxu0 0.0
      %422 = vmatprep.subr.mxu0 0.0
      %423 = vmatpush1.msra.mxu0 0.0
      %424 = vmatprep.subr.mxu0 0.0
      %425 = vmatpush1.msra.mxu0 0.0
      %426 = vmatprep.subr.mxu0 0.0
      %427 = vmatpush1.msra.mxu0 0.0
      %428 = vmatprep.subr.mxu0 0.0
      %429 = vmatpush1.msra.mxu0 0.0
      %430 = vmatprep.subr.mxu0 0.0
      %431 = vmatpush1.msra.mxu0 0.0
      %432 = vmatprep.subr.mxu0 0.0
      %433 = vmatpush1.msra.mxu0 0.0
      %434 = vmatprep.subr.mxu0 0.0
      %435 = vmatpush1.msra.mxu0 0.0
      %436 = vmatprep.subr.mxu0 0.0
      %437 = vmatpush1.msra.mxu0 0.0
      %438 = vmatprep.subr.mxu0 0.0
      %439 = vmatpush1.msra.mxu0 0.0
      %440 = vmatprep.subr.mxu0 0.0
      %441 = vmatpush1.msra.mxu0 0.0
      %442 = vmatprep.subr.mxu0 0.0
      %443 = vmatpush1.msra.mxu0 0.0
      %444 = vmatprep.subr.mxu0 0.0
      %445 = vmatpush1.msra.mxu0 0.0
      %446 = vmatprep.subr.mxu0 0.0
      %447 = vmatpush1.msra.mxu0 0.0
      %448 = vmatprep.subr.mxu0 0.0
      %449 = vmatpush1.msra.mxu0 0.0
      %450 = vmatprep.subr.mxu0 0.0
      %451 = vmatpush1.msra.mxu0 0.0
      %452 = vmatprep.subr.mxu0 0.0
      %453 = vmatpush1.msra.mxu0 0.0
      %454 = vmatprep.subr.mxu0 0.0
      %455 = vmatpush1.msra.mxu0 0.0
      %456 = vmatprep.subr.mxu0 0.0
      %457 = vmatpush1.msra.mxu0 0.0
      %458 = vmatprep.subr.mxu0 0.0
      %459 = vmatpush1.msra.mxu0 0.0
      %460 = vmatprep.subr.mxu0 0.0
      %461 = vmatpush1.msra.mxu0 0.0
      %462 = vmatprep.subr.mxu0 0.0
      %463 = vmatpush1.msra.mxu0 0.0
      %464 = vmatprep.subr.mxu0 0.0
      %465 = vmatpush1.msra.mxu0 0.0
      %466 = vmatprep.subr.mxu0 0.0
      %467 = vmatpush1.msra.mxu0 0.0
      %468 = vmatprep.mubr.f32.mxu0 0.0
      %v469 = vand.u32 %v221, 4294901760
      %v470 = vsub.f32 %v221, %v469
      %471 = vmatmul.mubr.f32.gmra.mrb[0].mxu0 %v470
      %v472 = vpop.f32.mrb[0].mxu0
      %v473 = vadd.f32 %v391, %v472
      %v474 = vpop.f32.mrb[0].mxu0
      %475 = vmatprep.mubr.f32.mxu0 0.0
      %v476 = vand.u32 %v224, 4294901760
      %v477 = vsub.f32 %v224, %v476
      %478 = vmatmul.mubr.f32.gmra.mrb[0].mxu0 %v477
      %v479 = vpop.f32.mrb[0].mxu0
      %v480 = vadd.f32 %v397, %v479
      %v481 = vpop.f32.mrb[0].mxu0
      %482 = vdwg.mxu0
      %483 = vmatprep.subr.mxu0 0.0
      %v484 = vand.u32 %v215, 4294901760
      %485 = vmatpush1.msra.mxu0 %v484
      %486 = vmatprep.subr.mxu0 0.0
      %v487 = vand.u32 %v216, 4294901760
      %488 = vmatpush1.msra.mxu0 %v487
      %489 = vmatprep.subr.mxu0 0.0
      %490 = vmatpush1.msra.mxu0 0.0
      %491 = vmatprep.subr.mxu0 0.0
      %492 = vmatpush1.msra.mxu0 0.0
      %493 = vmatprep.subr.mxu0 0.0
      %494 = vmatpush1.msra.mxu0 0.0
      %495 = vmatprep.subr.mxu0 0.0
      %496 = vmatpush1.msra.mxu0 0.0
      %497 = vmatprep.subr.mxu0 0.0
      %498 = vmatpush1.msra.mxu0 0.0
      %499 = vmatprep.subr.mxu0 0.0
      %500 = vmatpush1.msra.mxu0 0.0
      %501 = vmatprep.subr.mxu0 0.0
      %502 = vmatpush1.msra.mxu0 0.0
      %503 = vmatprep.subr.mxu0 0.0
      %504 = vmatpush1.msra.mxu0 0.0
      %505 = vmatprep.subr.mxu0 0.0
      %506 = vmatpush1.msra.mxu0 0.0
      %507 = vmatprep.subr.mxu0 0.0
      %508 = vmatpush1.msra.mxu0 0.0
      %509 = vmatprep.subr.mxu0 0.0
      %510 = vmatpush1.msra.mxu0 0.0
      %511 = vmatprep.subr.mxu0 0.0
      %512 = vmatpush1.msra.mxu0 0.0
      %513 = vmatprep.subr.mxu0 0.0
      %514 = vmatpush1.msra.mxu0 0.0
      %515 = vmatprep.subr.mxu0 0.0
      %516 = vmatpush1.msra.mxu0 0.0
      %517 = vmatprep.subr.mxu0 0.0
      %518 = vmatpush1.msra.mxu0 0.0
      %519 = vmatprep.subr.mxu0 0.0
      %520 = vmatpush1.msra.mxu0 0.0
      %521 = vmatprep.subr.mxu0 0.0
      %522 = vmatpush1.msra.mxu0 0.0
      %523 = vmatprep.subr.mxu0 0.0
      %524 = vmatpush1.msra.mxu0 0.0
      %525 = vmatprep.subr.mxu0 0.0
      %526 = vmatpush1.msra.mxu0 0.0
      %527 = vmatprep.subr.mxu0 0.0
      %528 = vmatpush1.msra.mxu0 0.0
      %529 = vmatprep.subr.mxu0 0.0
      %530 = vmatpush1.msra.mxu0 0.0
      %531 = vmatprep.subr.mxu0 0.0
      %532 = vmatpush1.msra.mxu0 0.0
      %533 = vmatprep.subr.mxu0 0.0
      %534 = vmatpush1.msra.mxu0 0.0
      %535 = vmatprep.subr.mxu0 0.0
      %536 = vmatpush1.msra.mxu0 0.0
      %537 = vmatprep.subr.mxu0 0.0
      %538 = vmatpush1.msra.mxu0 0.0
      %539 = vmatprep.subr.mxu0 0.0
      %540 = vmatpush1.msra.mxu0 0.0
      %541 = vmatprep.subr.mxu0 0.0
      %542 = vmatpush1.msra.mxu0 0.0
      %543 = vmatprep.subr.mxu0 0.0
      %544 = vmatpush1.msra.mxu0 0.0
      %545 = vmatprep.subr.mxu0 0.0
      %546 = vmatpush1.msra.mxu0 0.0
      %547 = vmatprep.subr.mxu0 0.0
      %548 = vmatpush1.msra.mxu0 0.0
      %549 = vmatprep.mubr.f32.mxu0 0.0
      %v550 = vand.u32 %v221, 4294901760
      %v551 = vsub.f32 %v221, %v550
      %v552 = vand.u32 %v551, 4294901760
      %553 = vmatmul.mubr.f32.gmra.mrb[0].mxu0 %v552
      %v554 = vpop.f32.mrb[0].mxu0
      %v555 = vadd.f32 %v473, %v554
      %v556 = vpop.f32.mrb[0].mxu0
      %557 = vmatprep.mubr.f32.mxu0 0.0
      %v558 = vand.u32 %v224, 4294901760
      %v559 = vsub.f32 %v224, %v558
      %v560 = vand.u32 %v559, 4294901760
      %561 = vmatmul.mubr.f32.gmra.mrb[0].mxu0 %v560
      %v562 = vpop.f32.mrb[0].mxu0
      %v563 = vadd.f32 %v480, %v562
      %v564 = vpop.f32.mrb[0].mxu0
      %565 = vdwg.mxu0
      %566 = vmatprep.subr.mxu0 0.0
      %v567 = vand.u32 %v215, 4294901760
      %v568 = vsub.f32 %v215, %v567
      %v569 = vand.u32 %v568, 4294901760
      %570 = vmatpush1.msra.mxu0 %v569
      %571 = vmatprep.subr.mxu0 0.0
      %v572 = vand.u32 %v216, 4294901760
      %v573 = vsub.f32 %v216, %v572
      %v574 = vand.u32 %v573, 4294901760
      %575 = vmatpush1.msra.mxu0 %v574
      %576 = vmatprep.subr.mxu0 0.0
      %577 = vmatpush1.msra.mxu0 0.0
      %578 = vmatprep.subr.mxu0 0.0
      %579 = vmatpush1.msra.mxu0 0.0
      %580 = vmatprep.subr.mxu0 0.0
      %581 = vmatpush1.msra.mxu0 0.0
      %582 = vmatprep.subr.mxu0 0.0
      %583 = vmatpush1.msra.mxu0 0.0
      %584 = vmatprep.subr.mxu0 0.0
      %585 = vmatpush1.msra.mxu0 0.0
      %586 = vmatprep.subr.mxu0 0.0
      %587 = vmatpush1.msra.mxu0 0.0
      %588 = vmatprep.subr.mxu0 0.0
      %589 = vmatpush1.msra.mxu0 0.0
      %590 = vmatprep.subr.mxu0 0.0
      %591 = vmatpush1.msra.mxu0 0.0
      %592 = vmatprep.subr.mxu0 0.0
      %593 = vmatpush1.msra.mxu0 0.0
      %594 = vmatprep.subr.mxu0 0.0
      %595 = vmatpush1.msra.mxu0 0.0
      %596 = vmatprep.subr.mxu0 0.0
      %597 = vmatpush1.msra.mxu0 0.0
      %598 = vmatprep.subr.mxu0 0.0
      %599 = vmatpush1.msra.mxu0 0.0
      %600 = vmatprep.subr.mxu0 0.0
      %601 = vmatpush1.msra.mxu0 0.0
      %602 = vmatprep.subr.mxu0 0.0
      %603 = vmatpush1.msra.mxu0 0.0
      %604 = vmatprep.subr.mxu0 0.0
      %605 = vmatpush1.msra.mxu0 0.0
      %606 = vmatprep.subr.mxu0 0.0
      %607 = vmatpush1.msra.mxu0 0.0
      %608 = vmatprep.subr.mxu0 0.0
      %609 = vmatpush1.msra.mxu0 0.0
      %610 = vmatprep.subr.mxu0 0.0
      %611 = vmatpush1.msra.mxu0 0.0
      %612 = vmatprep.subr.mxu0 0.0
      %613 = vmatpush1.msra.mxu0 0.0
      %614 = vmatprep.subr.mxu0 0.0
      %615 = vmatpush1.msra.mxu0 0.0
      %616 = vmatprep.subr.mxu0 0.0
      %617 = vmatpush1.msra.mxu0 0.0
      %618 = vmatprep.subr.mxu0 0.0
      %619 = vmatpush1.msra.mxu0 0.0
      %620 = vmatprep.subr.mxu0 0.0
      %621 = vmatpush1.msra.mxu0 0.0
      %622 = vmatprep.subr.mxu0 0.0
      %623 = vmatpush1.msra.mxu0 0.0
      %624 = vmatprep.subr.mxu0 0.0
      %625 = vmatpush1.msra.mxu0 0.0
      %626 = vmatprep.subr.mxu0 0.0
      %627 = vmatpush1.msra.mxu0 0.0
      %628 = vmatprep.subr.mxu0 0.0
      %629 = vmatpush1.msra.mxu0 0.0
      %630 = vmatprep.subr.mxu0 0.0
      %631 = vmatpush1.msra.mxu0 0.0
      %632 = vmatprep.subr.mxu0 0.0
      %633 = vmatpush1.msra.mxu0 0.0
      %634 = vmatprep.subr.mxu0 0.0
      %635 = vmatpush1.msra.mxu0 0.0
      %636 = vmatprep.mubr.f32.mxu0 0.0
      %v637 = vand.u32 %v221, 4294901760
      %638 = vmatmul.mubr.f32.gmra.mrb[0].mxu0 %v637
      %v639 = vpop.f32.mrb[0].mxu0
      %v640 = vadd.f32 %v555, %v639
      %v641 = vpop.f32.mrb[0].mxu0
      %642 = vmatprep.mubr.f32.mxu0 0.0
      %v643 = vand.u32 %v224, 4294901760
      %644 = vmatmul.mubr.f32.gmra.mrb[0].mxu0 %v643
      %v645 = vpop.f32.mrb[0].mxu0
      %v646 = vadd.f32 %v563, %v645
      %v647 = vpop.f32.mrb[0].mxu0
      %648 = vdwg.mxu0
      %649 = vmatprep.subr.mxu0 0.0
      %v650 = vand.u32 %v215, 4294901760
      %651 = vmatpush1.msra.mxu0 %v650
      %652 = vmatprep.subr.mxu0 0.0
      %v653 = vand.u32 %v216, 4294901760
      %654 = vmatpush1.msra.mxu0 %v653
      %655 = vmatprep.subr.mxu0 0.0
      %656 = vmatpush1.msra.mxu0 0.0
      %657 = vmatprep.subr.mxu0 0.0
      %658 = vmatpush1.msra.mxu0 0.0
      %659 = vmatprep.subr.mxu0 0.0
      %660 = vmatpush1.msra.mxu0 0.0
      %661 = vmatprep.subr.mxu0 0.0
      %662 = vmatpush1.msra.mxu0 0.0
      %663 = vmatprep.subr.mxu0 0.0
      %664 = vmatpush1.msra.mxu0 0.0
      %665 = vmatprep.subr.mxu0 0.0
      %666 = vmatpush1.msra.mxu0 0.0
      %667 = vmatprep.subr.mxu0 0.0
      %668 = vmatpush1.msra.mxu0 0.0
      %669 = vmatprep.subr.mxu0 0.0
      %670 = vmatpush1.msra.mxu0 0.0
      %671 = vmatprep.subr.mxu0 0.0
      %672 = vmatpush1.msra.mxu0 0.0
      %673 = vmatprep.subr.mxu0 0.0
      %674 = vmatpush1.msra.mxu0 0.0
      %675 = vmatprep.subr.mxu0 0.0
      %676 = vmatpush1.msra.mxu0 0.0
      %677 = vmatprep.subr.mxu0 0.0
      %678 = vmatpush1.msra.mxu0 0.0
      %679 = vmatprep.subr.mxu0 0.0
      %680 = vmatpush1.msra.mxu0 0.0
      %681 = vmatprep.subr.mxu0 0.0
      %682 = vmatpush1.msra.mxu0 0.0
      %683 = vmatprep.subr.mxu0 0.0
      %684 = vmatpush1.msra.mxu0 0.0
      %685 = vmatprep.subr.mxu0 0.0
      %686 = vmatpush1.msra.mxu0 0.0
      %687 = vmatprep.subr.mxu0 0.0
      %688 = vmatpush1.msra.mxu0 0.0
      %689 = vmatprep.subr.mxu0 0.0
      %690 = vmatpush1.msra.mxu0 0.0
      %691 = vmatprep.subr.mxu0 0.0
      %692 = vmatpush1.msra.mxu0 0.0
      %693 = vmatprep.subr.mxu0 0.0
      %694 = vmatpush1.msra.mxu0 0.0
      %695 = vmatprep.subr.mxu0 0.0
      %696 = vmatpush1.msra.mxu0 0.0
      %697 = vmatprep.subr.mxu0 0.0
      %698 = vmatpush1.msra.mxu0 0.0
      %699 = vmatprep.subr.mxu0 0.0
      %700 = vmatpush1.msra.mxu0 0.0
      %701 = vmatprep.subr.mxu0 0.0
      %702 = vmatpush1.msra.mxu0 0.0
      %703 = vmatprep.subr.mxu0 0.0
      %704 = vmatpush1.msra.mxu0 0.0
      %705 = vmatprep.subr.mxu0 0.0
      %706 = vmatpush1.msra.mxu0 0.0
      %707 = vmatprep.subr.mxu0 0.0
      %708 = vmatpush1.msra.mxu0 0.0
      %709 = vmatprep.subr.mxu0 0.0
      %710 = vmatpush1.msra.mxu0 0.0
      %711 = vmatprep.subr.mxu0 0.0
      %712 = vmatpush1.msra.mxu0 0.0
      %713 = vmatprep.subr.mxu0 0.0
      %714 = vmatpush1.msra.mxu0 0.0
      %715 = vmatprep.mubr.f32.mxu0 0.0
      %v716 = vand.u32 %v221, 4294901760
      %717 = vmatmul.mubr.f32.gmra.mrb[0].mxu0 %v716
      %v718 = vpop.f32.mrb[0].mxu0
      %v719 = vadd.f32 %v640, %v718
      %v720 = vpop.f32.mrb[0].mxu0
      %721 = vmatprep.mubr.f32.mxu0 0.0
      %v722 = vand.u32 %v224, 4294901760
      %723 = vmatmul.mubr.f32.gmra.mrb[0].mxu0 %v722
      %v724 = vpop.f32.mrb[0].mxu0
      %v725 = vadd.f32 %v646, %v724
      %v726 = vpop.f32.mrb[0].mxu0
      %727 = vdwg.mxu0
      %vm728 = vcmask 64512
      %729 = vst.msk [vmem:[%s213] sm:$0xff] %vm728, %v719
      %730 = vst.msk [vmem:[%s213 + $0x8] sm:$0xff] %vm728, %v725
      %s731 = smul.u32 2, %s19
      %p732 = scmp.lt.s32.totalorder %s18, 1
      %s733 = scalar_select %p732, %s18, 1
      %p734 = scmp.lt.s32.totalorder %s731, 1
      %s735 = scalar_select %p734, %s731, 1
      %p736 = scmp.lt.s32.totalorder %s20, 0
      %s737 = scalar_select %p736, %s20, 0
      %s738 = sadd.s32 %s737, %s735
      %s739 = smul.addr %s733, 2
      %s740 = sadd.s32 %s738, %s739
      %s741 = smul.addr %s740, 8
      %s742 = scalar_lea.vmem %s2, %s741
      // Predicated region
      $region29: #{tpu_custom_call.1} parent=27 // pred_check
        %p743 = pneg %p108
      $region30: #{tpu_custom_call.1} parent=27 // pred_check_branch
        %745 = sbr.rel (%p743) target = $region32
      $region31: #{tpu_custom_call.1} parent=27 // pred_region
        %s746 = smul.u32 2, %s19
      $region32: #{tpu_custom_call.1} parent=27 // pred_fallthru
        _
    $region28: #{tpu_custom_call.1} parent=5 // pred_fallthru
      _
    %p747 = scmp.le.s32.totalorder 2, %s8
    // Predicated region
    $region33: #{tpu_custom_call.1} parent=5 // pred_check
      %p748 = pneg %p747
    $region34: #{tpu_custom_call.1} parent=5 // pred_check_branch
      %750 = sbr.rel (%p748) target = $region36
    $region35: #{tpu_custom_call.1} parent=5 // pred_region
      %s751 = ssub.s32 %s8, 2
      // Predicated region
      $region37: #{tpu_custom_call.1} parent=35 // pred_check
        %p752 = pneg %p114
      $region38: #{tpu_custom_call.1} parent=35 // pred_check_branch
        %754 = sbr.rel (%p752) target = $region40
      $region39: #{tpu_custom_call.1} parent=35 // pred_region
        %s755 = smul.u32 2, %s22
        %p756 = scmp.lt.s32.totalorder %s21, 1
        %s757 = scalar_select %p756, %s21, 1
        %p758 = scmp.lt.s32.totalorder %s755, 1
        %s759 = scalar_select %p758, %s755, 1
        %p760 = scmp.lt.s32.totalorder %s23, 0
        %s761 = scalar_select %p760, %s23, 0
        %s762 = sadd.s32 %s761, %s759
        %s763 = smul.addr %s757, 2
        %s764 = sadd.s32 %s762, %s763
        %s765 = smul.addr %s764, 8
        %s766 = scalar_lea.vmem %s2, %s765
      $region40: #{tpu_custom_call.1} parent=35 // pred_fallthru
        _
    $region36: #{tpu_custom_call.1} parent=5 // pred_fallthru
      _
  $region6: #{tpu_custom_call.1} parent=0 // loop_footer
    %s12 = sadd.s32 1, %s8
  $region7: #{tpu_custom_call.1} parent=0 // loop_footer_branch
    %7 = sbr.rel target = $region3
  $region8: #{tpu_custom_call.1} parent=0 // loop_exit
    _

</llo_original>
